<compile_context>
chip_gen: v6e
topology: v6e:2x2x1
jax: 0.10.0
libtpu: 0.0.40
codegen_flags: <defaults>
</compile_context>

<pallas_src>
import functools

import numpy as np
import jax
import jax.numpy as jnp
from jax.experimental import pallas as pl
from jax.experimental.pallas import tpu as pltpu  # noqa: F401  (TPU backend)

EPS = 1e-5


def _bilinear_matrix(n_in, n_out):
    """(n_out, n_in) bilinear interpolation matrix, align_corners=True."""
    w = np.zeros((n_out, n_in), dtype=np.float32)
    if n_out == 1 or n_in == 1:
        w[:, 0] = 1.0
        return w
    scale = (n_in - 1) / (n_out - 1)
    for i in range(n_out):
        src = i * scale
        p0 = min(int(np.floor(src)), n_in - 1)
        p1 = min(p0 + 1, n_in - 1)
        f = src - p0
        w[i, p0] += 1.0 - f
        w[i, p1] += f
    return w


def _up_double_conv_kernel(x1_ref, x2_ref, up_ref, m1_ref, m2_ref,
                           w1_ref, g1_ref, be1_ref, w2_ref, g2_ref, be2_ref,
                           o_ref, *, n, c1, c2, H, W):
    f32 = jnp.float32
    HW = H * W
    L = n * HW

    def lane_roll(x, d):
        # out[:, l] = x[:, (l + d) mod L]; wrapped lanes are masked to 0 later.
        k = d % L
        if k == 0:
            return x
        return jnp.concatenate([x[:, k:], x[:, :k]], axis=-1)

    def to_lanes(x, c):
        # (n*c, HW) row-blocks  ->  (c, n*HW): batch folded into the lane axis.
        return jnp.concatenate([x[b * c:(b + 1) * c, :] for b in range(n)],
                               axis=-1)

    # ---- 1) bilinear x2 upsample + diffY/diffX pad -------------------------
    # ONE lane-dense MXU matmul against the combined (h1*w1, H*W) matrix.
    u = jnp.dot(x1_ref[...], up_ref[...], preferred_element_type=f32)  # (n*c1, HW)

    # ---- 2) channel concat [x2, up(x1)]: channels in sublanes, n*HW lanes --
    xcat = jnp.concatenate([to_lanes(x2_ref[...], c2), to_lanes(u, c1)], axis=0)

    # ---- 3) Conv3x3(SAME) as ONE im2col matmul + train-mode BN + ReLU ------
    # (conv bias omitted: exactly cancelled by the BN mean subtraction)
    def conv_bn_relu(x, wm_ref, mask_ref, g_ref, be_ref):
        taps = [lane_roll(x, dy * W + dx)
                for dy in (-1, 0, 1) for dx in (-1, 0, 1)]
        patches = jnp.concatenate(taps, axis=0) * mask_ref[...]   # (9*cin, L)
        y = jnp.dot(wm_ref[...], patches.astype(jnp.bfloat16),
                    preferred_element_type=f32)                   # (cout, L)
        # BatchNorm, training semantics: biased variance over batch + space.
        mean = jnp.mean(y, axis=1, keepdims=True)
        d = y - mean
        var = jnp.mean(d * d, axis=1, keepdims=True)
        yn = d * jax.lax.rsqrt(var + EPS) * g_ref[...] + be_ref[...]
        return jnp.maximum(yn, 0.0)

    y1 = conv_bn_relu(xcat, w1_ref, m1_ref, g1_ref, be1_ref)
    o_ref[...] = conv_bn_relu(y1, w2_ref, m2_ref, g2_ref, be2_ref)


def up_forward(x1_nchw, x2_nchw, p):
    n, c1, h1, w1 = x1_nchw.shape
    n2, c2, H, W = x2_nchw.shape
    assert n2 == n
    HW = H * W
    L = n * HW
    h2, w2 = 2 * h1, 2 * w1
    dy, dx = H - h2, W - w2

    # Combined bilinear-upsample matrix with the F.pad offsets folded in:
    # (h1*w1, H*W), bf16 MXU operand.
    wh_p = np.zeros((H, h1), np.float32)
    wh_p[dy // 2: dy // 2 + h2, :] = _bilinear_matrix(h1, h2)
    ww_p = np.zeros((W, w1), np.float32)
    ww_p[dx // 2: dx // 2 + w2, :] = _bilinear_matrix(w1, w2)
    up_mat = jnp.asarray(np.kron(wh_p, ww_p).T).astype(jnp.bfloat16)

    # 0/1 validity masks for the nine 3x3 taps on the (lane = b*HW + y*W + x)
    # grid; they also zero cross-row / cross-image lanes pulled in by rolls.
    q = np.arange(HW)
    yy, xx = q // W, q % W
    m9 = np.zeros((9, HW), np.float32)
    t = 0
    for ddy in (-1, 0, 1):
        for ddx in (-1, 0, 1):
            m9[t] = ((yy + ddy >= 0) & (yy + ddy < H) &
                     (xx + ddx >= 0) & (xx + ddx < W)).astype(np.float32)
            t += 1
    m9 = np.tile(m9, (1, n))                                       # (9, L)

    cin = c1 + c2
    cmid = p['w1'].shape[-1]
    cout = p['w2'].shape[-1]
    # Full-size masks (rows = tap-major, channel-minor) so the kernel does a
    # single exact-shape multiply per conv (no broadcasts).
    m1 = jnp.asarray(np.repeat(m9, cin, axis=0))                   # (9*cin, L)
    m2 = jnp.asarray(np.repeat(m9, cmid, axis=0))                  # (9*cmid, L)

    # Conv weights as (Cout, 9*Cin) bf16; column order = (ky, kx, ci),
    # matching the tap/channel row order of the im2col patch matrix.
    w1m = jnp.transpose(p['w1'], (3, 0, 1, 2)).reshape(cmid, 9 * cin)
    w2m = jnp.transpose(p['w2'], (3, 0, 1, 2)).reshape(cout, 9 * cmid)
    w1m = w1m.astype(jnp.bfloat16)
    w2m = w2m.astype(jnp.bfloat16)
    g1 = p['g1'].reshape(cmid, 1)
    be1 = p['be1'].reshape(cmid, 1)
    g2 = p['g2'].reshape(cout, 1)
    be2 = p['be2'].reshape(cout, 1)
    # Conv biases b1/b2 intentionally NOT passed: train-mode BN cancels them.

    # Kernel inputs: free (metadata) NCHW reshapes only.
    x1r = x1_nchw.reshape(n * c1, h1 * w1).astype(jnp.bfloat16)
    x2r = x2_nchw.reshape(n * c2, HW)

    kern = functools.partial(_up_double_conv_kernel,
                             n=n, c1=c1, c2=c2, H=H, W=W)
    y = pl.pallas_call(
        kern,
        out_shape=jax.ShapeDtypeStruct((cout, L), jnp.float32),
    )(x1r, x2r, up_mat, m1, m2, w1m, g1, be1, w2m, g2, be2)

    # Lane-dense kernel output (cout, n*H*W) -> NCHW in the wrapper.
    return jnp.transpose(y.reshape(cout, n, H, W), (1, 0, 2, 3))


# ----------------------------------------------------------------------------
# Pure-JAX reference (NCHW, lax.conv) for verification.
# ----------------------------------------------------------------------------
def reference_up(x1, x2, p):
    n, c1, h1, w1 = x1.shape
    wh = jnp.asarray(_bilinear_matrix(h1, 2 * h1))
    ww = jnp.asarray(_bilinear_matrix(w1, 2 * w1))
    x1u = jnp.einsum('ip,jq,ncpq->ncij', wh, ww, x1)
    dy = x2.shape[2] - x1u.shape[2]
    dx = x2.shape[3] - x1u.shape[3]
    x1u = jnp.pad(x1u, ((0, 0), (0, 0),
                        (dy // 2, dy - dy // 2), (dx // 2, dx - dx // 2)))
    x = jnp.concatenate([x2, x1u], axis=1)

    def conv_bn_relu(z, w, b, g, be):
        y = jax.lax.conv_general_dilated(
            z, w, (1, 1), 'SAME',
            dimension_numbers=('NCHW', 'HWIO', 'NCHW'))
        y = y + b[None, :, None, None]
        mean = y.mean(axis=(0, 2, 3), keepdims=True)
        var = ((y - mean) ** 2).mean(axis=(0, 2, 3), keepdims=True)
        y = (y - mean) / jnp.sqrt(var + EPS)
        y = y * g[None, :, None, None] + be[None, :, None, None]
        return jnp.maximum(y, 0.0)

    y = conv_bn_relu(x, p['w1'], p['b1'][0], p['g1'][0], p['be1'][0])
    y = conv_bn_relu(y, p['w2'], p['b2'][0], p['g2'][0], p['be2'][0])
    return y


if __name__ == "__main__":
    # Up(in_channels=4, out_channels=2): x1 and x2 each carry 2 channels;
    # after concat the DoubleConv sees 4 channels, mid=2, out=2.
    in_channels, out_channels = 4, 2
    cmid = in_channels // 2

    key = jax.random.PRNGKey(0)
    ks = jax.random.split(key, 10)
    params = {
        'w1':  0.3 * jax.random.normal(ks[0], (3, 3, in_channels, cmid), jnp.float32),
        'b1':  0.1 * jax.random.normal(ks[1], (1, cmid), jnp.float32),
        'g1':  1.0 + 0.1 * jax.random.normal(ks[2], (1, cmid), jnp.float32),
        'be1': 0.1 * jax.random.normal(ks[3], (1, cmid), jnp.float32),
        'w2':  0.3 * jax.random.normal(ks[4], (3, 3, cmid, out_channels), jnp.float32),
        'b2':  0.1 * jax.random.normal(ks[5], (1, out_channels), jnp.float32),
        'g2':  1.0 + 0.1 * jax.random.normal(ks[6], (1, out_channels), jnp.float32),
        'be2': 0.1 * jax.random.normal(ks[7], (1, out_channels), jnp.float32),
    }

    x1 = jax.random.normal(ks[8], (2, 2, 8, 8), jnp.float32)     # decoder feature
    x2 = jax.random.normal(ks[9], (2, 2, 16, 16), jnp.float32)   # skip connection

    out = jax.block_until_ready(up_forward(x1, x2, params))
    ref = jax.block_until_ready(reference_up(x1, x2, params))

    assert out.shape == (2, out_channels, 16, 16), out.shape
    # Tolerance reflects bf16 MXU operands (f32 accumulation / BN math).
    np.testing.assert_allclose(np.asarray(out), np.asarray(ref),
                               rtol=5e-2, atol=5e-2)
    print("KERNEL_OK")
</pallas_src>

<mosaic_0001>
module attributes {stable_mosaic.version = 11 : i64} {
  func.func @_up_double_conv_kernel(%arg0: memref<4x64xbf16, #tpu.memory_space<vmem>>, %arg1: memref<4x256xf32, #tpu.memory_space<vmem>>, %arg2: memref<64x256xbf16, #tpu.memory_space<vmem>>, %arg3: memref<36x512xf32, #tpu.memory_space<vmem>>, %arg4: memref<18x512xf32, #tpu.memory_space<vmem>>, %arg5: memref<2x36xbf16, #tpu.memory_space<vmem>>, %arg6: memref<2x1xf32, #tpu.memory_space<vmem>>, %arg7: memref<2x1xf32, #tpu.memory_space<vmem>>, %arg8: memref<2x18xbf16, #tpu.memory_space<vmem>>, %arg9: memref<2x1xf32, #tpu.memory_space<vmem>>, %arg10: memref<2x1xf32, #tpu.memory_space<vmem>>, %arg11: memref<2x512xf32, #tpu.memory_space<vmem>>) attributes {dimension_semantics = [], scalar_prefetch = 0 : i64, scratch_operands = 0 : i64, tpu.core_type = #tpu.core_type<tc>} {
    %c0 = arith.constant 0 : index
    %c0_0 = arith.constant 0 : index
    %0 = vector.load %arg0[%c0, %c0_0] : memref<4x64xbf16, #tpu.memory_space<vmem>>, vector<4x64xbf16>
    %c0_1 = arith.constant 0 : index
    %c0_2 = arith.constant 0 : index
    %1 = vector.load %arg2[%c0_1, %c0_2] : memref<64x256xbf16, #tpu.memory_space<vmem>>, vector<64x256xbf16>
    %cst = arith.constant dense<0.000000e+00> : vector<4x256xf32>
    %2 = tpu.matmul %0, %1, %cst {dimension_numbers = #tpu.dot_dimension_numbers<[1], [0], [0], [1], [0, 0, 1, 1], [], []>} : vector<4x64xbf16>, vector<64x256xbf16>, vector<4x256xf32> -> vector<4x256xf32>
    %c0_3 = arith.constant 0 : index
    %c0_4 = arith.constant 0 : index
    %3 = vector.load %arg1[%c0_3, %c0_4] : memref<4x256xf32, #tpu.memory_space<vmem>>, vector<4x256xf32>
    %4 = vector.extract_strided_slice %3 {offsets = [0, 0], sizes = [2, 256], strides = [1, 1]} : vector<4x256xf32> to vector<2x256xf32>
    %5 = vector.extract_strided_slice %3 {offsets = [2, 0], sizes = [2, 256], strides = [1, 1]} : vector<4x256xf32> to vector<2x256xf32>
    %6 = tpu.concatenate %4, %5 in 1 : vector<2x256xf32>, vector<2x256xf32> -> vector<2x512xf32>
    %7 = vector.extract_strided_slice %2 {offsets = [0, 0], sizes = [2, 256], strides = [1, 1]} : vector<4x256xf32> to vector<2x256xf32>
    %8 = vector.extract_strided_slice %2 {offsets = [2, 0], sizes = [2, 256], strides = [1, 1]} : vector<4x256xf32> to vector<2x256xf32>
    %9 = tpu.concatenate %7, %8 in 1 : vector<2x256xf32>, vector<2x256xf32> -> vector<2x512xf32>
    %10 = tpu.concatenate %6, %9 in 0 : vector<2x512xf32>, vector<2x512xf32> -> vector<4x512xf32>
    %11 = vector.extract_strided_slice %10 {offsets = [0, 495], sizes = [4, 17], strides = [1, 1]} : vector<4x512xf32> to vector<4x17xf32>
    %12 = vector.extract_strided_slice %10 {offsets = [0, 0], sizes = [4, 495], strides = [1, 1]} : vector<4x512xf32> to vector<4x495xf32>
    %13 = tpu.concatenate %11, %12 in 1 : vector<4x17xf32>, vector<4x495xf32> -> vector<4x512xf32>
    %14 = vector.extract_strided_slice %10 {offsets = [0, 496], sizes = [4, 16], strides = [1, 1]} : vector<4x512xf32> to vector<4x16xf32>
    %15 = vector.extract_strided_slice %10 {offsets = [0, 0], sizes = [4, 496], strides = [1, 1]} : vector<4x512xf32> to vector<4x496xf32>
    %16 = tpu.concatenate %14, %15 in 1 : vector<4x16xf32>, vector<4x496xf32> -> vector<4x512xf32>
    %17 = vector.extract_strided_slice %10 {offsets = [0, 497], sizes = [4, 15], strides = [1, 1]} : vector<4x512xf32> to vector<4x15xf32>
    %18 = vector.extract_strided_slice %10 {offsets = [0, 0], sizes = [4, 497], strides = [1, 1]} : vector<4x512xf32> to vector<4x497xf32>
    %19 = tpu.concatenate %17, %18 in 1 : vector<4x15xf32>, vector<4x497xf32> -> vector<4x512xf32>
    %20 = vector.extract_strided_slice %10 {offsets = [0, 511], sizes = [4, 1], strides = [1, 1]} : vector<4x512xf32> to vector<4x1xf32>
    %21 = vector.extract_strided_slice %10 {offsets = [0, 0], sizes = [4, 511], strides = [1, 1]} : vector<4x512xf32> to vector<4x511xf32>
    %22 = tpu.concatenate %20, %21 in 1 : vector<4x1xf32>, vector<4x511xf32> -> vector<4x512xf32>
    %23 = vector.extract_strided_slice %10 {offsets = [0, 1], sizes = [4, 511], strides = [1, 1]} : vector<4x512xf32> to vector<4x511xf32>
    %24 = vector.extract_strided_slice %10 {offsets = [0, 0], sizes = [4, 1], strides = [1, 1]} : vector<4x512xf32> to vector<4x1xf32>
    %25 = tpu.concatenate %23, %24 in 1 : vector<4x511xf32>, vector<4x1xf32> -> vector<4x512xf32>
    %26 = vector.extract_strided_slice %10 {offsets = [0, 15], sizes = [4, 497], strides = [1, 1]} : vector<4x512xf32> to vector<4x497xf32>
    %27 = vector.extract_strided_slice %10 {offsets = [0, 0], sizes = [4, 15], strides = [1, 1]} : vector<4x512xf32> to vector<4x15xf32>
    %28 = tpu.concatenate %26, %27 in 1 : vector<4x497xf32>, vector<4x15xf32> -> vector<4x512xf32>
    %29 = vector.extract_strided_slice %10 {offsets = [0, 16], sizes = [4, 496], strides = [1, 1]} : vector<4x512xf32> to vector<4x496xf32>
    %30 = vector.extract_strided_slice %10 {offsets = [0, 0], sizes = [4, 16], strides = [1, 1]} : vector<4x512xf32> to vector<4x16xf32>
    %31 = tpu.concatenate %29, %30 in 1 : vector<4x496xf32>, vector<4x16xf32> -> vector<4x512xf32>
    %32 = vector.extract_strided_slice %10 {offsets = [0, 17], sizes = [4, 495], strides = [1, 1]} : vector<4x512xf32> to vector<4x495xf32>
    %33 = vector.extract_strided_slice %10 {offsets = [0, 0], sizes = [4, 17], strides = [1, 1]} : vector<4x512xf32> to vector<4x17xf32>
    %34 = tpu.concatenate %32, %33 in 1 : vector<4x495xf32>, vector<4x17xf32> -> vector<4x512xf32>
    %35 = tpu.concatenate %13, %16, %19, %22, %10, %25, %28, %31, %34 in 0 : vector<4x512xf32>, vector<4x512xf32>, vector<4x512xf32>, vector<4x512xf32>, vector<4x512xf32>, vector<4x512xf32>, vector<4x512xf32>, vector<4x512xf32>, vector<4x512xf32> -> vector<36x512xf32>
    %c0_5 = arith.constant 0 : index
    %c0_6 = arith.constant 0 : index
    %36 = vector.load %arg3[%c0_5, %c0_6] : memref<36x512xf32, #tpu.memory_space<vmem>>, vector<36x512xf32>
    %37 = arith.mulf %35, %36 : vector<36x512xf32>
    %c0_7 = arith.constant 0 : index
    %c0_8 = arith.constant 0 : index
    %38 = vector.load %arg5[%c0_7, %c0_8] : memref<2x36xbf16, #tpu.memory_space<vmem>>, vector<2x36xbf16>
    %39 = arith.truncf %37 : vector<36x512xf32> to vector<36x512xbf16>
    %cst_9 = arith.constant dense<0.000000e+00> : vector<2x512xf32>
    %40 = tpu.matmul %38, %39, %cst_9 {dimension_numbers = #tpu.dot_dimension_numbers<[1], [0], [0], [1], [0, 0, 1, 1], [], []>} : vector<2x36xbf16>, vector<36x512xbf16>, vector<2x512xf32> -> vector<2x512xf32>
    %cst_10 = arith.constant dense<0.000000e+00> : vector<2xf32>
    %41 = vector.multi_reduction <add>, %40, %cst_10 [1] : vector<2x512xf32> to vector<2xf32>
    %42 = vector.shape_cast %41 : vector<2xf32> to vector<2x1xf32>
    %cst_11 = arith.constant 5.120000e+02 : f32
    %43 = vector.broadcast %cst_11 : f32 to vector<2x1xf32>
    %44 = arith.divf %42, %43 : vector<2x1xf32>
    %45 = vector.broadcast %44 : vector<2x1xf32> to vector<2x512xf32>
    %46 = arith.subf %40, %45 : vector<2x512xf32>
    %47 = arith.mulf %46, %46 : vector<2x512xf32>
    %cst_12 = arith.constant dense<0.000000e+00> : vector<2xf32>
    %48 = vector.multi_reduction <add>, %47, %cst_12 [1] : vector<2x512xf32> to vector<2xf32>
    %49 = vector.shape_cast %48 : vector<2xf32> to vector<2x1xf32>
    %cst_13 = arith.constant 5.120000e+02 : f32
    %50 = vector.broadcast %cst_13 : f32 to vector<2x1xf32>
    %51 = arith.divf %49, %50 : vector<2x1xf32>
    %cst_14 = arith.constant 9.99999974E-6 : f32
    %52 = vector.broadcast %cst_14 : f32 to vector<2x1xf32>
    %53 = arith.addf %51, %52 : vector<2x1xf32>
    %54 = math.rsqrt %53 : vector<2x1xf32>
    %55 = vector.broadcast %54 : vector<2x1xf32> to vector<2x512xf32>
    %56 = arith.mulf %46, %55 : vector<2x512xf32>
    %c0_15 = arith.constant 0 : index
    %c0_16 = arith.constant 0 : index
    %57 = vector.load %arg6[%c0_15, %c0_16] : memref<2x1xf32, #tpu.memory_space<vmem>>, vector<2x1xf32>
    %58 = vector.broadcast %57 : vector<2x1xf32> to vector<2x512xf32>
    %59 = arith.mulf %56, %58 : vector<2x512xf32>
    %c0_17 = arith.constant 0 : index
    %c0_18 = arith.constant 0 : index
    %60 = vector.load %arg7[%c0_17, %c0_18] : memref<2x1xf32, #tpu.memory_space<vmem>>, vector<2x1xf32>
    %61 = vector.broadcast %60 : vector<2x1xf32> to vector<2x512xf32>
    %62 = arith.addf %59, %61 : vector<2x512xf32>
    %cst_19 = arith.constant 0.000000e+00 : f32
    %63 = vector.broadcast %cst_19 : f32 to vector<2x512xf32>
    %64 = arith.maximumf %62, %63 : vector<2x512xf32>
    %65 = vector.extract_strided_slice %64 {offsets = [0, 495], sizes = [2, 17], strides = [1, 1]} : vector<2x512xf32> to vector<2x17xf32>
    %66 = vector.extract_strided_slice %64 {offsets = [0, 0], sizes = [2, 495], strides = [1, 1]} : vector<2x512xf32> to vector<2x495xf32>
    %67 = tpu.concatenate %65, %66 in 1 : vector<2x17xf32>, vector<2x495xf32> -> vector<2x512xf32>
    %68 = vector.extract_strided_slice %64 {offsets = [0, 496], sizes = [2, 16], strides = [1, 1]} : vector<2x512xf32> to vector<2x16xf32>
    %69 = vector.extract_strided_slice %64 {offsets = [0, 0], sizes = [2, 496], strides = [1, 1]} : vector<2x512xf32> to vector<2x496xf32>
    %70 = tpu.concatenate %68, %69 in 1 : vector<2x16xf32>, vector<2x496xf32> -> vector<2x512xf32>
    %71 = vector.extract_strided_slice %64 {offsets = [0, 497], sizes = [2, 15], strides = [1, 1]} : vector<2x512xf32> to vector<2x15xf32>
    %72 = vector.extract_strided_slice %64 {offsets = [0, 0], sizes = [2, 497], strides = [1, 1]} : vector<2x512xf32> to vector<2x497xf32>
    %73 = tpu.concatenate %71, %72 in 1 : vector<2x15xf32>, vector<2x497xf32> -> vector<2x512xf32>
    %74 = vector.extract_strided_slice %64 {offsets = [0, 511], sizes = [2, 1], strides = [1, 1]} : vector<2x512xf32> to vector<2x1xf32>
    %75 = vector.extract_strided_slice %64 {offsets = [0, 0], sizes = [2, 511], strides = [1, 1]} : vector<2x512xf32> to vector<2x511xf32>
    %76 = tpu.concatenate %74, %75 in 1 : vector<2x1xf32>, vector<2x511xf32> -> vector<2x512xf32>
    %77 = vector.extract_strided_slice %64 {offsets = [0, 1], sizes = [2, 511], strides = [1, 1]} : vector<2x512xf32> to vector<2x511xf32>
    %78 = vector.extract_strided_slice %64 {offsets = [0, 0], sizes = [2, 1], strides = [1, 1]} : vector<2x512xf32> to vector<2x1xf32>
    %79 = tpu.concatenate %77, %78 in 1 : vector<2x511xf32>, vector<2x1xf32> -> vector<2x512xf32>
    %80 = vector.extract_strided_slice %64 {offsets = [0, 15], sizes = [2, 497], strides = [1, 1]} : vector<2x512xf32> to vector<2x497xf32>
    %81 = vector.extract_strided_slice %64 {offsets = [0, 0], sizes = [2, 15], strides = [1, 1]} : vector<2x512xf32> to vector<2x15xf32>
    %82 = tpu.concatenate %80, %81 in 1 : vector<2x497xf32>, vector<2x15xf32> -> vector<2x512xf32>
    %83 = vector.extract_strided_slice %64 {offsets = [0, 16], sizes = [2, 496], strides = [1, 1]} : vector<2x512xf32> to vector<2x496xf32>
    %84 = vector.extract_strided_slice %64 {offsets = [0, 0], sizes = [2, 16], strides = [1, 1]} : vector<2x512xf32> to vector<2x16xf32>
    %85 = tpu.concatenate %83, %84 in 1 : vector<2x496xf32>, vector<2x16xf32> -> vector<2x512xf32>
    %86 = vector.extract_strided_slice %64 {offsets = [0, 17], sizes = [2, 495], strides = [1, 1]} : vector<2x512xf32> to vector<2x495xf32>
    %87 = vector.extract_strided_slice %64 {offsets = [0, 0], sizes = [2, 17], strides = [1, 1]} : vector<2x512xf32> to vector<2x17xf32>
    %88 = tpu.concatenate %86, %87 in 1 : vector<2x495xf32>, vector<2x17xf32> -> vector<2x512xf32>
    %89 = tpu.concatenate %67, %70, %73, %76, %64, %79, %82, %85, %88 in 0 : vector<2x512xf32>, vector<2x512xf32>, vector<2x512xf32>, vector<2x512xf32>, vector<2x512xf32>, vector<2x512xf32>, vector<2x512xf32>, vector<2x512xf32>, vector<2x512xf32> -> vector<18x512xf32>
    %c0_20 = arith.constant 0 : index
    %c0_21 = arith.constant 0 : index
    %90 = vector.load %arg4[%c0_20, %c0_21] : memref<18x512xf32, #tpu.memory_space<vmem>>, vector<18x512xf32>
    %91 = arith.mulf %89, %90 : vector<18x512xf32>
    %c0_22 = arith.constant 0 : index
    %c0_23 = arith.constant 0 : index
    %92 = vector.load %arg8[%c0_22, %c0_23] : memref<2x18xbf16, #tpu.memory_space<vmem>>, vector<2x18xbf16>
    %93 = arith.truncf %91 : vector<18x512xf32> to vector<18x512xbf16>
    %cst_24 = arith.constant dense<0.000000e+00> : vector<2x512xf32>
    %94 = tpu.matmul %92, %93, %cst_24 {dimension_numbers = #tpu.dot_dimension_numbers<[1], [0], [0], [1], [0, 0, 1, 1], [], []>} : vector<2x18xbf16>, vector<18x512xbf16>, vector<2x512xf32> -> vector<2x512xf32>
    %cst_25 = arith.constant dense<0.000000e+00> : vector<2xf32>
    %95 = vector.multi_reduction <add>, %94, %cst_25 [1] : vector<2x512xf32> to vector<2xf32>
    %96 = vector.shape_cast %95 : vector<2xf32> to vector<2x1xf32>
    %cst_26 = arith.constant 5.120000e+02 : f32
    %97 = vector.broadcast %cst_26 : f32 to vector<2x1xf32>
    %98 = arith.divf %96, %97 : vector<2x1xf32>
    %99 = vector.broadcast %98 : vector<2x1xf32> to vector<2x512xf32>
    %100 = arith.subf %94, %99 : vector<2x512xf32>
    %101 = arith.mulf %100, %100 : vector<2x512xf32>
    %cst_27 = arith.constant dense<0.000000e+00> : vector<2xf32>
    %102 = vector.multi_reduction <add>, %101, %cst_27 [1] : vector<2x512xf32> to vector<2xf32>
    %103 = vector.shape_cast %102 : vector<2xf32> to vector<2x1xf32>
    %cst_28 = arith.constant 5.120000e+02 : f32
    %104 = vector.broadcast %cst_28 : f32 to vector<2x1xf32>
    %105 = arith.divf %103, %104 : vector<2x1xf32>
    %cst_29 = arith.constant 9.99999974E-6 : f32
    %106 = vector.broadcast %cst_29 : f32 to vector<2x1xf32>
    %107 = arith.addf %105, %106 : vector<2x1xf32>
    %108 = math.rsqrt %107 : vector<2x1xf32>
    %109 = vector.broadcast %108 : vector<2x1xf32> to vector<2x512xf32>
    %110 = arith.mulf %100, %109 : vector<2x512xf32>
    %c0_30 = arith.constant 0 : index
    %c0_31 = arith.constant 0 : index
    %111 = vector.load %arg9[%c0_30, %c0_31] : memref<2x1xf32, #tpu.memory_space<vmem>>, vector<2x1xf32>
    %112 = vector.broadcast %111 : vector<2x1xf32> to vector<2x512xf32>
    %113 = arith.mulf %110, %112 : vector<2x512xf32>
    %c0_32 = arith.constant 0 : index
    %c0_33 = arith.constant 0 : index
    %114 = vector.load %arg10[%c0_32, %c0_33] : memref<2x1xf32, #tpu.memory_space<vmem>>, vector<2x1xf32>
    %115 = vector.broadcast %114 : vector<2x1xf32> to vector<2x512xf32>
    %116 = arith.addf %113, %115 : vector<2x512xf32>
    %cst_34 = arith.constant 0.000000e+00 : f32
    %117 = vector.broadcast %cst_34 : f32 to vector<2x512xf32>
    %118 = arith.maximumf %116, %117 : vector<2x512xf32>
    %c0_35 = arith.constant 0 : index
    %c0_36 = arith.constant 0 : index
    %119 = vector.load %arg11[%c0_35, %c0_36] : memref<2x512xf32, #tpu.memory_space<vmem>>, vector<2x512xf32>
    tpu.vector_store %arg11[%c0_35, %c0_36], %118 {strides = array<i32>} : memref<2x512xf32, #tpu.memory_space<vmem>>, vector<2x512xf32>,
    return
  }
}

</mosaic_0001>

<llo_original>
// kernel: tpu_custom_call.1
$region0: #{tpu_custom_call.1}
  #allocation0 [shape = 'u32[]', space=smem, size = 0x4, offset = 0x4, fixed_abs, tag = 'smem constant byte address 0x4 - core index']
  #allocation1 [shape = 'u32[144,128]{1,0:T(1,128)}', space=vmem, size = 0x12000, scoped, tag = 'internal scratch']
  %s0 = inlined_call_operand.vmem [shape: bf16[4,64], index: 0, kind: input, shape index: {}]
  %s1 = inlined_call_operand.vmem [shape: f32[4,256], index: 1, kind: input, shape index: {}]
  %s2 = inlined_call_operand.hbm [shape: bf16[64,256], index: 2, kind: input, shape index: {}]
  %s3 = inlined_call_operand.hbm [shape: f32[36,512], index: 3, kind: input, shape index: {}]
  %s4 = inlined_call_operand.hbm [shape: f32[18,512], index: 4, kind: input, shape index: {}]
  %s5 = inlined_call_operand.vmem [shape: bf16[2,36], index: 5, kind: input, shape index: {}]
  %s6 = inlined_call_operand.vmem [shape: f32[2,1], index: 6, kind: input, shape index: {}]
  %s7 = inlined_call_operand.vmem [shape: f32[2,1], index: 7, kind: input, shape index: {}]
  %s8 = inlined_call_operand.vmem [shape: bf16[2,18], index: 8, kind: input, shape index: {}]
  %s9 = inlined_call_operand.vmem [shape: f32[2,1], index: 9, kind: input, shape index: {}]
  %s10 = inlined_call_operand.vmem [shape: f32[2,1], index: 10, kind: input, shape index: {}]
  %s11 = inlined_call_operand.hbm [shape: f32[2,512], index: 11, kind: output, shape index: {}]
  %s12 = sld [smem:[#allocation0]]
  $region66: #{tpu_custom_call.1} parent=0
    _
  %s14 = ssub.s32 1, %s12
  %s15 = scalar_select 0, %s14, %s12
  $region1: #{tpu_custom_call.1} parent=0
    #allocation2 [shape = 'u8[32768]{0}', space=vmem, size = 0x8000, scoped, tag = 'input window, operand 2, single buffered']
    #allocation3 [shape = 's32[1]{0}', space=sflag, size = 0x4, scoped, tag = 'scoped memory for tpu_custom_call.1']
    #allocation4 [shape = 's32[1]{0}', space=sflag, size = 0x4, scoped, tag = 'scoped memory for tpu_custom_call.1']
    #allocation5 [shape = 'u8[81920]{0}', space=vmem, size = 0x14000, scoped, tag = 'input window, operand 3, single buffered']
    #allocation6 [shape = 's32[1]{0}', space=sflag, size = 0x4, scoped, tag = 'scoped memory for tpu_custom_call.1']
    #allocation7 [shape = 'u8[49152]{0}', space=vmem, size = 0xc000, scoped, tag = 'input window, operand 4, single buffered']
    #allocation8 [shape = 'u8[4096]{0}', space=vmem, size = 0x1000, scoped, tag = 'output window, operand 0, single buffered']
    %16 = vsyncpa [#allocation3], 0
    %17 = vsyncpa [#allocation6], 0
    %18 = vsyncpa [#allocation4], 0
    // Predicated region
    $region2: #{tpu_custom_call.1} parent=1 // pred_check
      _
    $region3: #{tpu_custom_call.1} parent=1 // pred_check_branch
      %20 = sbr.rel (0) target = $region5
    $region4: #{tpu_custom_call.1} parent=1 // pred_region
      _
    $region5: #{tpu_custom_call.1} parent=1 // pred_fallthru
      _
    // Predicated region
    $region6: #{tpu_custom_call.1} parent=1 // pred_check
      _
    $region7: #{tpu_custom_call.1} parent=1 // pred_check_branch
      %22 = sbr.rel (0) target = $region9
    $region8: #{tpu_custom_call.1} parent=1 // pred_region
      _
    $region9: #{tpu_custom_call.1} parent=1 // pred_fallthru
      _
    // Predicated region
    $region10: #{tpu_custom_call.1} parent=1 // pred_check
      _
    $region11: #{tpu_custom_call.1} parent=1 // pred_check_branch
      %24 = sbr.rel (0) target = $region13
    $region12: #{tpu_custom_call.1} parent=1 // pred_region
      %s26 = ssub.s32 1024, 1024
      %27 = vsyncadd [#allocation3], %s26
      %s28 = sshll.u32 [#allocation2], 4
      %s29 = int_to_ptr.vmem [resolvable:$true] %s28
      %34 = dma.hbm_to_vmem [thread:$0]  %s2, 1024, %s29, [#allocation3], 128, 128, 8
    $region13: #{tpu_custom_call.1} parent=1 // pred_fallthru
      _
    // Predicated region
    $region14: #{tpu_custom_call.1} parent=1 // pred_check
      _
    $region15: #{tpu_custom_call.1} parent=1 // pred_check_branch
      %36 = sbr.rel (0) target = $region17
    $region16: #{tpu_custom_call.1} parent=1 // pred_region
      %s38 = ssub.s32 2560, 2560
      %39 = vsyncadd [#allocation6], %s38
      %s40 = sshll.u32 [#allocation5], 4
      %s41 = int_to_ptr.vmem [resolvable:$true] %s40
      %46 = dma.hbm_to_vmem [thread:$0]  %s3, 2560, %s41, [#allocation6], 512, 512, 32
    $region17: #{tpu_custom_call.1} parent=1 // pred_fallthru
      _
    // Predicated region
    $region18: #{tpu_custom_call.1} parent=1 // pred_check
      _
    $region19: #{tpu_custom_call.1} parent=1 // pred_check_branch
      %48 = sbr.rel (0) target = $region21
    $region20: #{tpu_custom_call.1} parent=1 // pred_region
      %s50 = ssub.s32 1536, 1536
      %51 = vsyncadd [#allocation6], %s50
      %s52 = sshll.u32 [#allocation7], 4
      %s53 = int_to_ptr.vmem [resolvable:$true] %s52
      %58 = dma.hbm_to_vmem [thread:$0]  %s4, 1536, %s53, [#allocation6], 512, 512, 32
    $region21: #{tpu_custom_call.1} parent=1 // pred_fallthru
      _
    // Predicated region
    $region22: #{tpu_custom_call.1} parent=1 // pred_check
      _
    $region23: #{tpu_custom_call.1} parent=1 // pred_check_branch
      %60 = sbr.rel (0) target = $region25
    $region24: #{tpu_custom_call.1} parent=1 // pred_region
      _
    $region25: #{tpu_custom_call.1} parent=1 // pred_fallthru
      _
    // Predicated region
    $region26: #{tpu_custom_call.1} parent=1 // pred_check
      _
    $region27: #{tpu_custom_call.1} parent=1 // pred_check_branch
      %62 = sbr.rel (0) target = $region29
    $region28: #{tpu_custom_call.1} parent=1 // pred_region
      _
    $region29: #{tpu_custom_call.1} parent=1 // pred_fallthru
      _
    // Predicated region
    $region30: #{tpu_custom_call.1} parent=1 // pred_check
      _
    $region31: #{tpu_custom_call.1} parent=1 // pred_check_branch
      %64 = sbr.rel (0) target = $region33
    $region32: #{tpu_custom_call.1} parent=1 // pred_region
      _
    $region33: #{tpu_custom_call.1} parent=1 // pred_fallthru
      _
    // Predicated region
    $region34: #{tpu_custom_call.1} parent=1 // pred_check
      _
    $region35: #{tpu_custom_call.1} parent=1 // pred_check_branch
      %66 = sbr.rel (0) target = $region37
    $region36: #{tpu_custom_call.1} parent=1 // pred_region
      _
    $region37: #{tpu_custom_call.1} parent=1 // pred_fallthru
      _
    // Predicated region
    $region38: #{tpu_custom_call.1} parent=1 // pred_check
      _
    $region39: #{tpu_custom_call.1} parent=1 // pred_check_branch
      %68 = sbr.rel (0) target = $region41
    $region40: #{tpu_custom_call.1} parent=1 // pred_region
      _
    $region41: #{tpu_custom_call.1} parent=1 // pred_fallthru
      _
    // Predicated region
    $region42: #{tpu_custom_call.1} parent=1 // pred_check
      _
    $region43: #{tpu_custom_call.1} parent=1 // pred_check_branch
      %70 = sbr.rel (0) target = $region45
    $region44: #{tpu_custom_call.1} parent=1 // pred_region
      _
    $region45: #{tpu_custom_call.1} parent=1 // pred_fallthru
      _
    // Predicated region
    $region46: #{tpu_custom_call.1} parent=1 // pred_check
      _
    $region47: #{tpu_custom_call.1} parent=1 // pred_check_branch
      %72 = sbr.rel (0) target = $region49
    $region48: #{tpu_custom_call.1} parent=1 // pred_region
      %73 = dma.done [#allocation3], 1024
    $region49: #{tpu_custom_call.1} parent=1 // pred_fallthru
      _
    // Predicated region
    $region50: #{tpu_custom_call.1} parent=1 // pred_check
      _
    $region51: #{tpu_custom_call.1} parent=1 // pred_check_branch
      %75 = sbr.rel (0) target = $region53
    $region52: #{tpu_custom_call.1} parent=1 // pred_region
      %76 = dma.done [#allocation6], 2560
    $region53: #{tpu_custom_call.1} parent=1 // pred_fallthru
      _
    // Predicated region
    $region54: #{tpu_custom_call.1} parent=1 // pred_check
      _
    $region55: #{tpu_custom_call.1} parent=1 // pred_check_branch
      %78 = sbr.rel (0) target = $region57
    $region56: #{tpu_custom_call.1} parent=1 // pred_region
      %79 = dma.done [#allocation6], 1536
    $region57: #{tpu_custom_call.1} parent=1 // pred_fallthru
      _
    %v81 = vld [vmem:[%s0] sm:$0x3]
    %v82 = vld [vmem:[#allocation2] sm:$0xff]
    %v83 = vld [vmem:[#allocation2 + $0x8] sm:$0xff]
    %v84 = vld [vmem:[#allocation2 + $0x10] sm:$0xff]
    %v85 = vld [vmem:[#allocation2 + $0x18] sm:$0xff]
    %v86 = vld [vmem:[#allocation2 + $0x20] sm:$0xff]
    %v87 = vld [vmem:[#allocation2 + $0x28] sm:$0xff]
    %v88 = vld [vmem:[#allocation2 + $0x30] sm:$0xff]
    %v89 = vld [vmem:[#allocation2 + $0x38] sm:$0xff]
    %v98 = vunpack.c.l.b16 %v82
    %v99 = vunpack.c.h.b16 %v82
    %v100 = vunpack.c.l.b16 %v83
    %v101 = vunpack.c.h.b16 %v83
    %v102 = vunpack.c.l.b16 %v84
    %v103 = vunpack.c.h.b16 %v84
    %v104 = vunpack.c.l.b16 %v85
    %v105 = vunpack.c.h.b16 %v85
    %v106 = vunpack.c.l.b16 %v86
    %v107 = vunpack.c.h.b16 %v86
    %v108 = vunpack.c.l.b16 %v87
    %v109 = vunpack.c.h.b16 %v87
    %v110 = vunpack.c.l.b16 %v88
    %v111 = vunpack.c.h.b16 %v88
    %v112 = vunpack.c.l.b16 %v89
    %v113 = vunpack.c.h.b16 %v89
    %v114 = vpack.c.b16 %v100, %v98
    %v115 = vpack.c.b16 %v101, %v99
    %v116 = vpack.c.b16 %v104, %v102
    %v117 = vpack.c.b16 %v105, %v103
    %v118 = vpack.c.b16 %v108, %v106
    %v119 = vpack.c.b16 %v109, %v107
    %v120 = vpack.c.b16 %v112, %v110
    %v121 = vpack.c.b16 %v113, %v111
    %vm130 = vcmask 523264
    %v132 = vsel %vm130, %v81, 0
    %134 = vmatprep.subr.bf16.mxu0 0
    %135 = vmatpush1.bf16.msra.mxu0 0
    %136 = vmatprep.subr.bf16.mxu0 0
    %137 = vmatpush1.bf16.msra.mxu0 0
    %138 = vmatprep.subr.bf16.mxu0 0
    %139 = vmatpush1.bf16.msra.mxu0 0
    %140 = vmatprep.subr.bf16.mxu0 0
    %141 = vmatpush1.bf16.msra.mxu0 0
    %142 = vmatprep.subr.bf16.mxu0 %v121
    %143 = vmatpush1.bf16.msra.mxu0 %v120
    %144 = vmatprep.subr.bf16.mxu0 %v119
    %145 = vmatpush1.bf16.msra.mxu0 %v118
    %146 = vmatprep.subr.bf16.mxu0 %v117
    %147 = vmatpush1.bf16.msra.mxu0 %v116
    %148 = vmatprep.subr.bf16.mxu0 %v115
    %149 = vmatpush1.bf16.msra.mxu0 %v114
    %150 = vmatprep.subr.bf16.mxu0 0
    %151 = vmatpush2.bf16.msra.mxu0 0
    %152 = vmatprep.subr.bf16.mxu0 0
    %153 = vmatpush2.bf16.msra.mxu0 0
    %154 = vmatprep.subr.bf16.mxu0 0
    %155 = vmatpush2.bf16.msra.mxu0 0
    %156 = vmatprep.subr.bf16.mxu0 0
    %157 = vmatpush2.bf16.msra.mxu0 0
    %158 = vmatprep.subr.bf16.mxu0 0
    %159 = vmatpush2.bf16.msra.mxu0 0
    %160 = vmatprep.subr.bf16.mxu0 0
    %161 = vmatpush2.bf16.msra.mxu0 0
    %162 = vmatprep.subr.bf16.mxu0 0
    %163 = vmatpush2.bf16.msra.mxu0 0
    %164 = vmatprep.subr.bf16.mxu0 0
    %165 = vmatpush2.bf16.msra.mxu0 0
    %166 = vmatprep.mubr.bf16.mxu0 0
    %167 = vmatmul.mubr.bf16.gmra.mxu0 %v132
    %v168 = vpop.f32.mrf.mxu0
    %v169 = vadd.f32 0.0, %v168
    %v170 = vpop.f32.mrf.mxu0
    %v171 = vadd.f32 0.0, %v170
    %v172 = vpop.f32.mrf.mxu0
    %v173 = vpop.f32.mrf.mxu0
    %174 = vdwg.mxu0
    %v175 = vld [vmem:[%s1] sm:$0xff]
    %v177 = vcombine.high %v175, %v175
    %v179 = vrot.slane %v175, 2
    %v180 = vrot.slane %v177, 2
    %v185 = vrot.slane %v169, 2
    %v186 = vrot.slane %v171, 2
    %v187 = vrot.slane %v169, 6
    %v188 = vrot.slane %v171, 6
    %v189 = vrot.slane %v185, 6
    %v190 = vrot.slane %v186, 6
    %vm195 = vcmask 1041408
    %v196 = vsel %vm195, %v175, %v187
    %v197 = vsel %vm195, %v177, %v188
    %v198 = vsel %vm195, %v179, %v189
    %v199 = vsel %vm195, %v180, %v190
    %201 = vrot.lane.b32.xlu0 %v199, 17
    %v202 = vpop.permute.xlu0 %201
    %207 = vrot.lane.b32.xlu0 %v196, 17
    %v208 = vpop.permute.xlu0 %207
    %209 = vrot.lane.b32.xlu0 %v197, 17
    %v210 = vpop.permute.xlu0 %209
    %211 = vrot.lane.b32.xlu0 %v198, 17
    %v212 = vpop.permute.xlu0 %211
    %vm213 = vcmask 138240
    %v214 = vsel %vm213, %v208, %v210
    %v215 = vsel %vm213, %v210, %v212
    %v216 = vsel %vm213, %v212, %v202
    %v221 = vsel %vm213, %v202, %v208
    %222 = vrot.lane.b32.xlu0 %v199, 16
    %v223 = vpop.permute.xlu0 %222
    %225 = vrot.lane.b32.xlu0 %v196, 16
    %v226 = vpop.permute.xlu0 %225
    %227 = vrot.lane.b32.xlu0 %v197, 16
    %v228 = vpop.permute.xlu0 %227
    %229 = vrot.lane.b32.xlu0 %v198, 16
    %v230 = vpop.permute.xlu0 %229
    %vm231 = vcmask 130048
    %v232 = vsel %vm231, %v226, %v228
    %v233 = vsel %vm231, %v228, %v230
    %v234 = vsel %vm231, %v230, %v223
    %v236 = vsel %vm231, %v223, %v226
    %237 = vrot.lane.b32.xlu0 %v199, 15
    %v238 = vpop.permute.xlu0 %237
    %240 = vrot.lane.b32.xlu0 %v196, 15
    %v241 = vpop.permute.xlu0 %240
    %242 = vrot.lane.b32.xlu0 %v197, 15
    %v243 = vpop.permute.xlu0 %242
    %244 = vrot.lane.b32.xlu0 %v198, 15
    %v245 = vpop.permute.xlu0 %244
    %vm246 = vcmask 121856
    %v247 = vsel %vm246, %v241, %v243
    %v248 = vsel %vm246, %v243, %v245
    %v249 = vsel %vm246, %v245, %v238
    %v254 = vsel %vm246, %v238, %v241
    %255 = vrot.lane.b32.xlu0 %v199, 1
    %v256 = vpop.permute.xlu0 %255
    %258 = vrot.lane.b32.xlu0 %v196, 1
    %v259 = vpop.permute.xlu0 %258
    %260 = vrot.lane.b32.xlu0 %v197, 1
    %v261 = vpop.permute.xlu0 %260
    %262 = vrot.lane.b32.xlu0 %v198, 1
    %v263 = vpop.permute.xlu0 %262
    %vm264 = vcmask 7168
    %v265 = vsel %vm264, %v259, %v261
    %v266 = vsel %vm264, %v261, %v263
    %v267 = vsel %vm264, %v263, %v256
    %v269 = vsel %vm264, %v256, %v259
    %270 = vrot.lane.b32.xlu0 %v196, 127
    %v271 = vpop.permute.xlu0 %270
    %272 = vrot.lane.b32.xlu0 %v197, 127
    %v273 = vpop.permute.xlu0 %272
    %274 = vrot.lane.b32.xlu0 %v198, 127
    %v275 = vpop.permute.xlu0 %274
    %276 = vrot.lane.b32.xlu0 %v199, 127
    %v277 = vpop.permute.xlu0 %276
    %vm278 = vcmask 1039360
    %v279 = vsel %vm278, %v271, %v273
    %v280 = vsel %vm278, %v273, %v275
    %v281 = vsel %vm278, %v275, %v277
    %v284 = vsel %vm278, %v277, %v271
    %285 = vrot.lane.b32.xlu0 %v196, 113
    %v286 = vpop.permute.xlu0 %285
    %287 = vrot.lane.b32.xlu0 %v197, 113
    %v288 = vpop.permute.xlu0 %287
    %289 = vrot.lane.b32.xlu0 %v198, 113
    %v290 = vpop.permute.xlu0 %289
    %291 = vrot.lane.b32.xlu0 %v199, 113
    %v292 = vpop.permute.xlu0 %291
    %vm293 = vcmask 924672
    %v294 = vsel %vm293, %v286, %v288
    %v295 = vsel %vm293, %v288, %v290
    %v296 = vsel %vm293, %v290, %v292
    %v302 = vsel %vm293, %v292, %v286
    %303 = vrot.lane.b32.xlu0 %v196, 112
    %v304 = vpop.permute.xlu0 %303
    %305 = vrot.lane.b32.xlu0 %v197, 112
    %v306 = vpop.permute.xlu0 %305
    %307 = vrot.lane.b32.xlu0 %v198, 112
    %v308 = vpop.permute.xlu0 %307
    %309 = vrot.lane.b32.xlu0 %v199, 112
    %v310 = vpop.permute.xlu0 %309
    %vm311 = vcmask 916480
    %v312 = vsel %vm311, %v304, %v306
    %v313 = vsel %vm311, %v306, %v308
    %v314 = vsel %vm311, %v308, %v310
    %v317 = vsel %vm311, %v310, %v304
    %318 = vrot.lane.b32.xlu0 %v196, 111
    %v319 = vpop.permute.xlu0 %318
    %320 = vrot.lane.b32.xlu0 %v197, 111
    %v321 = vpop.permute.xlu0 %320
    %322 = vrot.lane.b32.xlu0 %v198, 111
    %v323 = vpop.permute.xlu0 %322
    %324 = vrot.lane.b32.xlu0 %v199, 111
    %v325 = vpop.permute.xlu0 %324
    %vm326 = vcmask 908288
    %v327 = vsel %vm326, %v319, %v321
    %v328 = vsel %vm326, %v321, %v323
    %v329 = vsel %vm326, %v323, %v325
    %v335 = vsel %vm326, %v325, %v319
    %v337 = vrot.slane %v236, 4
    %v338 = vrot.slane %v232, 4
    %v339 = vrot.slane %v233, 4
    %v340 = vrot.slane %v234, 4
    %v346 = vrot.slane %v269, 4
    %v347 = vrot.slane %v265, 4
    %v348 = vrot.slane %v266, 4
    %v349 = vrot.slane %v267, 4
    %v355 = vrot.slane %v279, 4
    %v356 = vrot.slane %v280, 4
    %v357 = vrot.slane %v281, 4
    %v358 = vrot.slane %v284, 4
    %v364 = vrot.slane %v312, 4
    %v365 = vrot.slane %v313, 4
    %v366 = vrot.slane %v314, 4
    %v367 = vrot.slane %v317, 4
    %vm372 = vcmask 1043456
    %v373 = vsel %vm372, %v221, %v337
    %v374 = vsel %vm372, %v214, %v338
    %v375 = vsel %vm372, %v215, %v339
    %v376 = vsel %vm372, %v216, %v340
    %v377 = vsel %vm372, %v254, %v346
    %v378 = vsel %vm372, %v247, %v347
    %v379 = vsel %vm372, %v248, %v348
    %v380 = vsel %vm372, %v249, %v349
    %v381 = vsel %vm372, %v196, %v355
    %v382 = vsel %vm372, %v197, %v356
    %v383 = vsel %vm372, %v198, %v357
    %v384 = vsel %vm372, %v199, %v358
    %v385 = vsel %vm372, %v294, %v364
    %v386 = vsel %vm372, %v295, %v365
    %v387 = vsel %vm372, %v296, %v366
    %v388 = vsel %vm372, %v302, %v367
    %v389 = vld [vmem:[#allocation5] sm:$0xff]
    %v390 = vld [vmem:[#allocation5 + $0x8] sm:$0xff]
    %v391 = vld [vmem:[#allocation5 + $0x10] sm:$0xff]
    %v392 = vld [vmem:[#allocation5 + $0x18] sm:$0xff]
    %v393 = vld [vmem:[#allocation5 + $0x20] sm:$0xff]
    %v394 = vld [vmem:[#allocation5 + $0x28] sm:$0xff]
    %v395 = vld [vmem:[#allocation5 + $0x30] sm:$0xff]
    %v396 = vld [vmem:[#allocation5 + $0x38] sm:$0xff]
    %v397 = vld [vmem:[#allocation5 + $0x40] sm:$0xff]
    %v398 = vld [vmem:[#allocation5 + $0x48] sm:$0xff]
    %v399 = vld [vmem:[#allocation5 + $0x50] sm:$0xff]
    %v400 = vld [vmem:[#allocation5 + $0x58] sm:$0xff]
    %v401 = vld [vmem:[#allocation5 + $0x60] sm:$0xff]
    %v402 = vld [vmem:[#allocation5 + $0x68] sm:$0xff]
    %v403 = vld [vmem:[#allocation5 + $0x70] sm:$0xff]
    %v404 = vld [vmem:[#allocation5 + $0x78] sm:$0xff]
    %v405 = vld [vmem:[#allocation5 + $0x80] sm:$0xf]
    %v406 = vld [vmem:[#allocation5 + $0x88] sm:$0xf]
    %v407 = vld [vmem:[#allocation5 + $0x90] sm:$0xf]
    %v408 = vld [vmem:[#allocation5 + $0x98] sm:$0xf]
    %v409 = vmul.f32 %v373, %v389
    %v410 = vmul.f32 %v374, %v390
    %v411 = vmul.f32 %v375, %v391
    %v412 = vmul.f32 %v376, %v392
    %v413 = vmul.f32 %v377, %v393
    %v414 = vmul.f32 %v378, %v394
    %v415 = vmul.f32 %v379, %v395
    %v416 = vmul.f32 %v380, %v396
    %v417 = vmul.f32 %v381, %v397
    %v418 = vmul.f32 %v382, %v398
    %v419 = vmul.f32 %v383, %v399
    %v420 = vmul.f32 %v384, %v400
    %v421 = vmul.f32 %v385, %v401
    %v422 = vmul.f32 %v386, %v402
    %v423 = vmul.f32 %v387, %v403
    %v424 = vmul.f32 %v388, %v404
    %v425 = vmul.f32 %v327, %v405
    %v426 = vmul.f32 %v328, %v406
    %v427 = vmul.f32 %v329, %v407
    %v428 = vmul.f32 %v335, %v408
    %v429 = vld [vmem:[%s5] sm:$0x1]
    %v430 = vpack.c.bf16 %v413, %v409
    %v431 = vpack.c.bf16 %v414, %v410
    %v432 = vpack.c.bf16 %v415, %v411
    %v433 = vpack.c.bf16 %v416, %v412
    %v434 = vpack.c.bf16 %v421, %v417
    %v435 = vpack.c.bf16 %v422, %v418
    %v436 = vpack.c.bf16 %v423, %v419
    %v437 = vpack.c.bf16 %v424, %v420
    %v438 = vpack.c.bf16 %v425, %v425
    %v439 = vpack.c.bf16 %v426, %v426
    %v440 = vpack.c.bf16 %v427, %v427
    %v441 = vpack.c.bf16 %v428, %v428
    %vm442 = vcmask 293888
    %v444 = vsel %vm442, %v429, 0
    %v447 = vsel %vm195, %v438, 0
    %v450 = vsel %vm195, %v439, 0
    %v453 = vsel %vm195, %v440, 0
    %v456 = vsel %vm195, %v441, 0
    %458 = vmatprep.subr.bf16.mxu0 0
    %459 = vmatpush1.bf16.msra.mxu0 0
    %460 = vmatprep.subr.bf16.mxu0 0
    %461 = vmatpush1.bf16.msra.mxu0 0
    %462 = vmatprep.subr.bf16.mxu0 0
    %463 = vmatpush1.bf16.msra.mxu0 0
    %464 = vmatprep.subr.bf16.mxu0 0
    %465 = vmatpush1.bf16.msra.mxu0 0
    %466 = vmatprep.subr.bf16.mxu0 0
    %467 = vmatpush1.bf16.msra.mxu0 0
    %468 = vmatprep.subr.bf16.mxu0 %v450
    %469 = vmatpush1.bf16.msra.mxu0 %v447
    %470 = vmatprep.subr.bf16.mxu0 %v435
    %471 = vmatpush1.bf16.msra.mxu0 %v434
    %472 = vmatprep.subr.bf16.mxu0 %v431
    %473 = vmatpush1.bf16.msra.mxu0 %v430
    %474 = vmatprep.subr.bf16.mxu0 0
    %475 = vmatpush2.bf16.msra.mxu0 0
    %476 = vmatprep.subr.bf16.mxu0 0
    %477 = vmatpush2.bf16.msra.mxu0 0
    %478 = vmatprep.subr.bf16.mxu0 0
    %479 = vmatpush2.bf16.msra.mxu0 0
    %480 = vmatprep.subr.bf16.mxu0 0
    %481 = vmatpush2.bf16.msra.mxu0 0
    %482 = vmatprep.subr.bf16.mxu0 0
    %483 = vmatpush2.bf16.msra.mxu0 0
    %484 = vmatprep.subr.bf16.mxu0 0
    %485 = vmatpush2.bf16.msra.mxu0 0
    %486 = vmatprep.subr.bf16.mxu0 0
    %487 = vmatpush2.bf16.msra.mxu0 0
    %488 = vmatprep.subr.bf16.mxu0 0
    %489 = vmatpush2.bf16.msra.mxu0 0
    %490 = vmatprep.mubr.bf16.mxu0 0
    %491 = vmatmul.mubr.bf16.gmra.mxu0 %v444
    %v492 = vpop.f32.mrf.mxu0
    %v493 = vadd.f32 0.0, %v492
    %v494 = vpop.f32.mrf.mxu0
    %v495 = vadd.f32 0.0, %v494
    %v496 = vpop.f32.mrf.mxu0
    %v497 = vpop.f32.mrf.mxu0
    %498 = vdwg.mxu0
    %499 = vmatprep.subr.bf16.mxu0 0
    %500 = vmatpush1.bf16.msra.mxu0 0
    %501 = vmatprep.subr.bf16.mxu0 0
    %502 = vmatpush1.bf16.msra.mxu0 0
    %503 = vmatprep.subr.bf16.mxu0 0
    %504 = vmatpush1.bf16.msra.mxu0 0
    %505 = vmatprep.subr.bf16.mxu0 0
    %506 = vmatpush1.bf16.msra.mxu0 0
    %507 = vmatprep.subr.bf16.mxu0 0
    %508 = vmatpush1.bf16.msra.mxu0 0
    %509 = vmatprep.subr.bf16.mxu0 %v456
    %510 = vmatpush1.bf16.msra.mxu0 %v453
    %511 = vmatprep.subr.bf16.mxu0 %v437
    %512 = vmatpush1.bf16.msra.mxu0 %v436
    %513 = vmatprep.subr.bf16.mxu0 %v433
    %514 = vmatpush1.bf16.msra.mxu0 %v432
    %515 = vmatprep.subr.bf16.mxu0 0
    %516 = vmatpush2.bf16.msra.mxu0 0
    %517 = vmatprep.subr.bf16.mxu0 0
    %518 = vmatpush2.bf16.msra.mxu0 0
    %519 = vmatprep.subr.bf16.mxu0 0
    %520 = vmatpush2.bf16.msra.mxu0 0
    %521 = vmatprep.subr.bf16.mxu0 0
    %522 = vmatpush2.bf16.msra.mxu0 0
    %523 = vmatprep.subr.bf16.mxu0 0
    %524 = vmatpush2.bf16.msra.mxu0 0
    %525 = vmatprep.subr.bf16.mxu0 0
    %526 = vmatpush2.bf16.msra.mxu0 0
    %527 = vmatprep.subr.bf16.mxu0 0
    %528 = vmatpush2.bf16.msra.mxu0 0
    %529 = vmatprep.subr.bf16.mxu0 0
    %530 = vmatpush2.bf16.msra.mxu0 0
    %531 = vmatprep.mubr.bf16.mxu0 0
    %532 = vmatmul.mubr.bf16.gmra.mxu0 %v444
    %v533 = vpop.f32.mrf.mxu0
    %v534 = vadd.f32 0.0, %v533
    %v535 = vpop.f32.mrf.mxu0
    %v536 = vadd.f32 0.0, %v535
    %v537 = vpop.f32.mrf.mxu0
    %v538 = vpop.f32.mrf.mxu0
    %539 = vdwg.mxu0
    %v540 = vsel %vm195, %v493, 0.0
    %v541 = vsel %vm195, %v495, 0.0
    %v542 = vadd.f32 %v540, %v541
    %v543 = vsel %vm195, %v534, 0.0
    %v544 = vadd.f32 %v542, %v543
    %v545 = vsel %vm195, %v536, 0.0
    %v546 = vadd.f32 %v544, %v545
    %547 = vadd.xlane.f32.xlu0 %v546
    %v548 = vpop.xlane.xlu0 %547
    %v549 = vrcp.pop 512.0
    %v550 = vmul.f32 %v548, %v549
    %v551 = vsub.f32 %v493, %v550
    %v552 = vsub.f32 %v495, %v550
    %v553 = vsub.f32 %v534, %v550
    %v554 = vsub.f32 %v536, %v550
    %v555 = vmul.f32 %v551, %v551
    %v556 = vmul.f32 %v552, %v552
    %v557 = vmul.f32 %v553, %v553
    %v558 = vmul.f32 %v554, %v554
    %v559 = vsel %vm195, %v555, 0.0
    %v560 = vsel %vm195, %v556, 0.0
    %v561 = vadd.f32 %v559, %v560
    %v562 = vsel %vm195, %v557, 0.0
    %v563 = vadd.f32 %v561, %v562
    %v564 = vsel %vm195, %v558, 0.0
    %v565 = vadd.f32 %v563, %v564
    %566 = vadd.xlane.f32.xlu0 %v565
    %v567 = vpop.xlane.xlu0 %566
    %v568 = vmul.f32 %v567, %v549
    %v569 = vadd.f32 %v568, 1e-05
    %v570 = vrsqrt.pop %v569
    %v571 = vmul.f32 %v551, %v570
    %v572 = vmul.f32 %v552, %v570
    %v573 = vmul.f32 %v553, %v570
    %v574 = vmul.f32 %v554, %v570
    %v575 = vld [vmem:[%s6] sm:$0x3]
    %577 = vset.pattern.permute.xlu0 0
    %578 = vperm.xlu0 %577, %v575
    %v579 = vpop.permute.xlu0 %578
    %v581 = vmul.f32 %v571, %v579
    %v582 = vmul.f32 %v572, %v579
    %v583 = vmul.f32 %v573, %v579
    %v584 = vmul.f32 %v574, %v579
    %v585 = vld [vmem:[%s7] sm:$0x3]
    %587 = vset.pattern.permute.xlu0 0
    %588 = vperm.xlu0 %587, %v585
    %v589 = vpop.permute.xlu0 %588
    %v591 = vadd.f32 %v581, %v589
    %v592 = vadd.f32 %v582, %v589
    %v593 = vadd.f32 %v583, %v589
    %v594 = vadd.f32 %v584, %v589
    %v595 = vmax.f32 %v591, 0.0
    %v596 = vmax.f32 %v592, 0.0
    %v597 = vmax.f32 %v593, 0.0
    %v598 = vmax.f32 %v594, 0.0
    %600 = vrot.lane.b32.xlu0 %v598, 17
    %v601 = vpop.permute.xlu0 %600
    %606 = vrot.lane.b32.xlu0 %v595, 17
    %v607 = vpop.permute.xlu0 %606
    %608 = vrot.lane.b32.xlu0 %v596, 17
    %v609 = vpop.permute.xlu0 %608
    %610 = vrot.lane.b32.xlu0 %v597, 17
    %v611 = vpop.permute.xlu0 %610
    %v612 = vsel %vm213, %v607, %v609
    %v613 = vsel %vm213, %v609, %v611
    %v614 = vsel %vm213, %v611, %v601
    %v619 = vsel %vm213, %v601, %v607
    %620 = vrot.lane.b32.xlu0 %v598, 16
    %v621 = vpop.permute.xlu0 %620
    %623 = vrot.lane.b32.xlu0 %v595, 16
    %v624 = vpop.permute.xlu0 %623
    %625 = vrot.lane.b32.xlu0 %v596, 16
    %v626 = vpop.permute.xlu0 %625
    %627 = vrot.lane.b32.xlu0 %v597, 16
    %v628 = vpop.permute.xlu0 %627
    %v629 = vsel %vm231, %v624, %v626
    %v630 = vsel %vm231, %v626, %v628
    %v631 = vsel %vm231, %v628, %v621
    %v633 = vsel %vm231, %v621, %v624
    %634 = vrot.lane.b32.xlu0 %v598, 15
    %v635 = vpop.permute.xlu0 %634
    %637 = vrot.lane.b32.xlu0 %v595, 15
    %v638 = vpop.permute.xlu0 %637
    %639 = vrot.lane.b32.xlu0 %v596, 15
    %v640 = vpop.permute.xlu0 %639
    %641 = vrot.lane.b32.xlu0 %v597, 15
    %v642 = vpop.permute.xlu0 %641
    %v643 = vsel %vm246, %v638, %v640
    %v644 = vsel %vm246, %v640, %v642
    %v645 = vsel %vm246, %v642, %v635
    %v647 = vsel %vm246, %v635, %v638
    %648 = vrot.lane.b32.xlu0 %v598, 1
    %v649 = vpop.permute.xlu0 %648
    %651 = vrot.lane.b32.xlu0 %v595, 1
    %v652 = vpop.permute.xlu0 %651
    %653 = vrot.lane.b32.xlu0 %v596, 1
    %v654 = vpop.permute.xlu0 %653
    %655 = vrot.lane.b32.xlu0 %v597, 1
    %v656 = vpop.permute.xlu0 %655
    %v657 = vsel %vm264, %v652, %v654
    %v658 = vsel %vm264, %v654, %v656
    %v659 = vsel %vm264, %v656, %v649
    %v661 = vsel %vm264, %v649, %v652
    %662 = vrot.lane.b32.xlu0 %v595, 127
    %v663 = vpop.permute.xlu0 %662
    %664 = vrot.lane.b32.xlu0 %v596, 127
    %v665 = vpop.permute.xlu0 %664
    %666 = vrot.lane.b32.xlu0 %v597, 127
    %v667 = vpop.permute.xlu0 %666
    %668 = vrot.lane.b32.xlu0 %v598, 127
    %v669 = vpop.permute.xlu0 %668
    %v670 = vsel %vm278, %v663, %v665
    %v671 = vsel %vm278, %v665, %v667
    %v672 = vsel %vm278, %v667, %v669
    %v675 = vsel %vm278, %v669, %v663
    %676 = vrot.lane.b32.xlu0 %v595, 113
    %v677 = vpop.permute.xlu0 %676
    %678 = vrot.lane.b32.xlu0 %v596, 113
    %v679 = vpop.permute.xlu0 %678
    %680 = vrot.lane.b32.xlu0 %v597, 113
    %v681 = vpop.permute.xlu0 %680
    %682 = vrot.lane.b32.xlu0 %v598, 113
    %v683 = vpop.permute.xlu0 %682
    %v684 = vsel %vm293, %v677, %v679
    %v685 = vsel %vm293, %v679, %v681
    %v686 = vsel %vm293, %v681, %v683
    %v689 = vsel %vm293, %v683, %v677
    %690 = vrot.lane.b32.xlu0 %v595, 112
    %v691 = vpop.permute.xlu0 %690
    %692 = vrot.lane.b32.xlu0 %v596, 112
    %v693 = vpop.permute.xlu0 %692
    %694 = vrot.lane.b32.xlu0 %v597, 112
    %v695 = vpop.permute.xlu0 %694
    %696 = vrot.lane.b32.xlu0 %v598, 112
    %v697 = vpop.permute.xlu0 %696
    %v698 = vsel %vm311, %v691, %v693
    %v699 = vsel %vm311, %v693, %v695
    %v700 = vsel %vm311, %v695, %v697
    %v703 = vsel %vm311, %v697, %v691
    %704 = vrot.lane.b32.xlu0 %v595, 111
    %v705 = vpop.permute.xlu0 %704
    %706 = vrot.lane.b32.xlu0 %v596, 111
    %v707 = vpop.permute.xlu0 %706
    %708 = vrot.lane.b32.xlu0 %v597, 111
    %v709 = vpop.permute.xlu0 %708
    %710 = vrot.lane.b32.xlu0 %v598, 111
    %v711 = vpop.permute.xlu0 %710
    %v712 = vsel %vm326, %v705, %v707
    %v713 = vsel %vm326, %v707, %v709
    %v714 = vsel %vm326, %v709, %v711
    %v720 = vsel %vm326, %v711, %v705
    %v722 = vrot.slane %v633, 6
    %v723 = vrot.slane %v629, 6
    %v724 = vrot.slane %v630, 6
    %v725 = vrot.slane %v631, 6
    %v731 = vrot.slane %v647, 4
    %v732 = vrot.slane %v643, 4
    %v733 = vrot.slane %v644, 4
    %v734 = vrot.slane %v645, 4
    %v740 = vrot.slane %v661, 2
    %v741 = vrot.slane %v657, 2
    %v742 = vrot.slane %v658, 2
    %v743 = vrot.slane %v659, 2
    %v749 = vrot.slane %v670, 6
    %v750 = vrot.slane %v671, 6
    %v751 = vrot.slane %v672, 6
    %v752 = vrot.slane %v675, 6
    %v758 = vrot.slane %v684, 4
    %v759 = vrot.slane %v685, 4
    %v760 = vrot.slane %v686, 4
    %v761 = vrot.slane %v689, 4
    %v767 = vrot.slane %v698, 2
    %v768 = vrot.slane %v699, 2
    %v769 = vrot.slane %v700, 2
    %v770 = vrot.slane %v703, 2
    %v775 = vsel %vm195, %v619, %v722
    %v776 = vsel %vm195, %v612, %v723
    %v777 = vsel %vm195, %v613, %v724
    %v778 = vsel %vm195, %v614, %v725
    %v779 = vsel %vm372, %v775, %v731
    %v780 = vsel %vm372, %v776, %v732
    %v781 = vsel %vm372, %v777, %v733
    %v782 = vsel %vm372, %v778, %v734
    %vm783 = vcmask 1045504
    %v784 = vsel %vm783, %v779, %v740
    %v785 = vsel %vm783, %v780, %v741
    %v786 = vsel %vm783, %v781, %v742
    %v787 = vsel %vm783, %v782, %v743
    %v788 = vsel %vm195, %v595, %v749
    %v789 = vsel %vm195, %v596, %v750
    %v790 = vsel %vm195, %v597, %v751
    %v791 = vsel %vm195, %v598, %v752
    %v792 = vsel %vm372, %v788, %v758
    %v793 = vsel %vm372, %v789, %v759
    %v794 = vsel %vm372, %v790, %v760
    %v795 = vsel %vm372, %v791, %v761
    %v796 = vsel %vm783, %v792, %v767
    %v797 = vsel %vm783, %v793, %v768
    %v798 = vsel %vm783, %v794, %v769
    %v799 = vsel %vm783, %v795, %v770
    %v800 = vld [vmem:[#allocation7] sm:$0xff]
    %v801 = vld [vmem:[#allocation7 + $0x8] sm:$0xff]
    %v802 = vld [vmem:[#allocation7 + $0x10] sm:$0xff]
    %v803 = vld [vmem:[#allocation7 + $0x18] sm:$0xff]
    %v804 = vld [vmem:[#allocation7 + $0x20] sm:$0xff]
    %v805 = vld [vmem:[#allocation7 + $0x28] sm:$0xff]
    %v806 = vld [vmem:[#allocation7 + $0x30] sm:$0xff]
    %v807 = vld [vmem:[#allocation7 + $0x38] sm:$0xff]
    %v808 = vld [vmem:[#allocation7 + $0x40] sm:$0x3]
    %v809 = vld [vmem:[#allocation7 + $0x48] sm:$0x3]
    %v810 = vld [vmem:[#allocation7 + $0x50] sm:$0x3]
    %v811 = vld [vmem:[#allocation7 + $0x58] sm:$0x3]
    %v812 = vmul.f32 %v784, %v800
    %v813 = vmul.f32 %v785, %v801
    %v814 = vmul.f32 %v786, %v802
    %v815 = vmul.f32 %v787, %v803
    %v816 = vmul.f32 %v796, %v804
    %v817 = vmul.f32 %v797, %v805
    %v818 = vmul.f32 %v798, %v806
    %v819 = vmul.f32 %v799, %v807
    %v820 = vmul.f32 %v712, %v808
    %v821 = vmul.f32 %v713, %v809
    %v822 = vmul.f32 %v714, %v810
    %v823 = vmul.f32 %v720, %v811
    %v824 = vld [vmem:[%s8] sm:$0x1]
    %v825 = vpack.c.bf16 %v816, %v812
    %v826 = vpack.c.bf16 %v817, %v813
    %v827 = vpack.c.bf16 %v818, %v814
    %v828 = vpack.c.bf16 %v819, %v815
    %v829 = vpack.c.bf16 %v820, %v820
    %v830 = vpack.c.bf16 %v821, %v821
    %v831 = vpack.c.bf16 %v822, %v822
    %v832 = vpack.c.bf16 %v823, %v823
    %vm833 = vcmask 146432
    %v835 = vsel %vm833, %v824, 0
    %vm837 = vcmask 1040384
    %v839 = vsel %vm837, %v829, 0
    %v842 = vsel %vm837, %v830, 0
    %v845 = vsel %vm837, %v831, 0
    %v848 = vsel %vm837, %v832, 0
    %850 = vmatprep.subr.bf16.mxu0 0
    %851 = vmatpush1.bf16.msra.mxu0 0
    %852 = vmatprep.subr.bf16.mxu0 0
    %853 = vmatpush1.bf16.msra.mxu0 0
    %854 = vmatprep.subr.bf16.mxu0 0
    %855 = vmatpush1.bf16.msra.mxu0 0
    %856 = vmatprep.subr.bf16.mxu0 0
    %857 = vmatpush1.bf16.msra.mxu0 0
    %858 = vmatprep.subr.bf16.mxu0 0
    %859 = vmatpush1.bf16.msra.mxu0 0
    %860 = vmatprep.subr.bf16.mxu0 0
    %861 = vmatpush1.bf16.msra.mxu0 0
    %862 = vmatprep.subr.bf16.mxu0 %v842
    %863 = vmatpush1.bf16.msra.mxu0 %v839
    %864 = vmatprep.subr.bf16.mxu0 %v826
    %865 = vmatpush1.bf16.msra.mxu0 %v825
    %866 = vmatprep.subr.bf16.mxu0 0
    %867 = vmatpush2.bf16.msra.mxu0 0
    %868 = vmatprep.subr.bf16.mxu0 0
    %869 = vmatpush2.bf16.msra.mxu0 0
    %870 = vmatprep.subr.bf16.mxu0 0
    %871 = vmatpush2.bf16.msra.mxu0 0
    %872 = vmatprep.subr.bf16.mxu0 0
    %873 = vmatpush2.bf16.msra.mxu0 0
    %874 = vmatprep.subr.bf16.mxu0 0
    %875 = vmatpush2.bf16.msra.mxu0 0
    %876 = vmatprep.subr.bf16.mxu0 0
    %877 = vmatpush2.bf16.msra.mxu0 0
    %878 = vmatprep.subr.bf16.mxu0 0
    %879 = vmatpush2.bf16.msra.mxu0 0
    %880 = vmatprep.subr.bf16.mxu0 0
    %881 = vmatpush2.bf16.msra.mxu0 0
    %882 = vmatprep.mubr.bf16.mxu0 0
    %883 = vmatmul.mubr.bf16.gmra.mxu0 %v835
    %v884 = vpop.f32.mrf.mxu0
    %v885 = vadd.f32 0.0, %v884
    %v886 = vpop.f32.mrf.mxu0
    %v887 = vadd.f32 0.0, %v886
    %v888 = vpop.f32.mrf.mxu0
    %v889 = vpop.f32.mrf.mxu0
    %890 = vdwg.mxu0
    %891 = vmatprep.subr.bf16.mxu0 0
    %892 = vmatpush1.bf16.msra.mxu0 0
    %893 = vmatprep.subr.bf16.mxu0 0
    %894 = vmatpush1.bf16.msra.mxu0 0
    %895 = vmatprep.subr.bf16.mxu0 0
    %896 = vmatpush1.bf16.msra.mxu0 0
    %897 = vmatprep.subr.bf16.mxu0 0
    %898 = vmatpush1.bf16.msra.mxu0 0
    %899 = vmatprep.subr.bf16.mxu0 0
    %900 = vmatpush1.bf16.msra.mxu0 0
    %901 = vmatprep.subr.bf16.mxu0 0
    %902 = vmatpush1.bf16.msra.mxu0 0
    %903 = vmatprep.subr.bf16.mxu0 %v848
    %904 = vmatpush1.bf16.msra.mxu0 %v845
    %905 = vmatprep.subr.bf16.mxu0 %v828
    %906 = vmatpush1.bf16.msra.mxu0 %v827
    %907 = vmatprep.subr.bf16.mxu0 0
    %908 = vmatpush2.bf16.msra.mxu0 0
    %909 = vmatprep.subr.bf16.mxu0 0
    %910 = vmatpush2.bf16.msra.mxu0 0
    %911 = vmatprep.subr.bf16.mxu0 0
    %912 = vmatpush2.bf16.msra.mxu0 0
    %913 = vmatprep.subr.bf16.mxu0 0
    %914 = vmatpush2.bf16.msra.mxu0 0
    %915 = vmatprep.subr.bf16.mxu0 0
    %916 = vmatpush2.bf16.msra.mxu0 0
    %917 = vmatprep.subr.bf16.mxu0 0
    %918 = vmatpush2.bf16.msra.mxu0 0
    %919 = vmatprep.subr.bf16.mxu0 0
    %920 = vmatpush2.bf16.msra.mxu0 0
    %921 = vmatprep.subr.bf16.mxu0 0
    %922 = vmatpush2.bf16.msra.mxu0 0
    %923 = vmatprep.mubr.bf16.mxu0 0
    %924 = vmatmul.mubr.bf16.gmra.mxu0 %v835
    %v925 = vpop.f32.mrf.mxu0
    %v926 = vadd.f32 0.0, %v925
    %v927 = vpop.f32.mrf.mxu0
    %v928 = vadd.f32 0.0, %v927
    %v929 = vpop.f32.mrf.mxu0
    %v930 = vpop.f32.mrf.mxu0
    %931 = vdwg.mxu0
    %v932 = vsel %vm195, %v885, 0.0
    %v933 = vsel %vm195, %v887, 0.0
    %v934 = vadd.f32 %v932, %v933
    %v935 = vsel %vm195, %v926, 0.0
    %v936 = vadd.f32 %v934, %v935
    %v937 = vsel %vm195, %v928, 0.0
    %v938 = vadd.f32 %v936, %v937
    %939 = vadd.xlane.f32.xlu0 %v938
    %v940 = vpop.xlane.xlu0 %939
    %v941 = vmul.f32 %v940, %v549
    %v942 = vsub.f32 %v885, %v941
    %v943 = vsub.f32 %v887, %v941
    %v944 = vsub.f32 %v926, %v941
    %v945 = vsub.f32 %v928, %v941
    %v946 = vmul.f32 %v942, %v942
    %v947 = vmul.f32 %v943, %v943
    %v948 = vmul.f32 %v944, %v944
    %v949 = vmul.f32 %v945, %v945
    %v950 = vsel %vm195, %v946, 0.0
    %v951 = vsel %vm195, %v947, 0.0
    %v952 = vadd.f32 %v950, %v951
    %v953 = vsel %vm195, %v948, 0.0
    %v954 = vadd.f32 %v952, %v953
    %v955 = vsel %vm195, %v949, 0.0
    %v956 = vadd.f32 %v954, %v955
    %957 = vadd.xlane.f32.xlu0 %v956
    %v958 = vpop.xlane.xlu0 %957
    %v959 = vmul.f32 %v958, %v549
    %v960 = vadd.f32 %v959, 1e-05
    %v961 = vrsqrt.pop %v960
    %v962 = vmul.f32 %v942, %v961
    %v963 = vmul.f32 %v943, %v961
    %v964 = vmul.f32 %v944, %v961
    %v965 = vmul.f32 %v945, %v961
    %v966 = vld [vmem:[%s9] sm:$0x3]
    %968 = vset.pattern.permute.xlu0 0
    %969 = vperm.xlu0 %968, %v966
    %v970 = vpop.permute.xlu0 %969
    %v972 = vmul.f32 %v962, %v970
    %v973 = vmul.f32 %v963, %v970
    %v974 = vmul.f32 %v964, %v970
    %v975 = vmul.f32 %v965, %v970
    %v976 = vld [vmem:[%s10] sm:$0x3]
    %978 = vset.pattern.permute.xlu0 0
    %979 = vperm.xlu0 %978, %v976
    %v980 = vpop.permute.xlu0 %979
    %v982 = vadd.f32 %v972, %v980
    %v983 = vadd.f32 %v973, %v980
    %v984 = vadd.f32 %v974, %v980
    %v985 = vadd.f32 %v975, %v980
    %v986 = vmax.f32 %v982, 0.0
    %v987 = vmax.f32 %v983, 0.0
    %v988 = vmax.f32 %v984, 0.0
    %v989 = vmax.f32 %v985, 0.0
    %v994 = vcombine.low %v986, %v987
    %v995 = vcombine.low %v988, %v989
    %v997 = vunpack.c.l.s4 1983009808
    %v998 = vunpack.c.0.s8 %v997
    %v999 = vlaneseq
    %v1000 = vshrl.u32 %v999, 7
    %v1001 = vsub.s32 %v998, %v1000
    %v1002 = vrot.slane %v994, %v1001
    %v1004 = vunpack.c.l.s4 1983009808
    %v1005 = vunpack.c.0.s8 %v1004
    %v1006 = vlaneseq
    %v1007 = vshrl.u32 %v1006, 7
    %v1008 = vsub.s32 %v1005, %v1007
    %v1009 = vrot.slane %v995, %v1008
    %v1010 = vcombine.low %v1002, %v1009
    %1012 = vst [vmem:[#allocation8] sm:$0xff] %v1010
    // Predicated region
    $region58: #{tpu_custom_call.1} parent=1 // pred_check
      _
    $region59: #{tpu_custom_call.1} parent=1 // pred_check_branch
      %1014 = sbr.rel (0) target = $region61
    $region60: #{tpu_custom_call.1} parent=1 // pred_region
      %s1016 = ssub.s32 128, 128
      %1017 = vsyncadd [#allocation4], %s1016
      %s1019 = sshll.u32 [#allocation8], 4
      %s1020 = int_to_ptr.vmem [resolvable:$true] %s1019
      %1022 = dma.vmem_to_hbm [thread:$0]  %s1020, 128, %s11, [#allocation4]
    $region61: #{tpu_custom_call.1} parent=1 // pred_fallthru
      _
    // Predicated region
    $region62: #{tpu_custom_call.1} parent=1 // pred_check
      _
    $region63: #{tpu_custom_call.1} parent=1 // pred_check_branch
      %1024 = sbr.rel (0) target = $region65
    $region64: #{tpu_custom_call.1} parent=1 // pred_region
      %1025 = dma.done [#allocation4], 128
    $region65: #{tpu_custom_call.1} parent=1 // pred_fallthru
      _
    %1026 = vsyncpa [#allocation3], 1
    %1027 = vsyncpa [#allocation6], 1
    %1028 = vsyncpa [#allocation4], 1

</llo_original>
